<compile_context>
chip_gen: v7x
topology: tpu7x:2x2x1
jax: 0.10.0
libtpu: 0.0.40
codegen_flags: <defaults>
</compile_context>

<pallas_src>
import functools

import numpy as np
import jax
import jax.numpy as jnp
from jax.experimental import pallas as pl
from jax.experimental.pallas import tpu as pltpu

LANE = 128        # lane width (last dim)
SUBLANE = 8       # sublane width (second-to-last dim)
_SMALL_N = 256    # graphs up to this many nodes take the single fused call
_DEFAULT_TILE = 512


def _round_up(x, m):
    return ((x + m - 1) // m) * m


def _pad2(a, rows, cols, dtype=None):
    r, c = a.shape
    out = jnp.pad(a, ((0, rows - r), (0, cols - c)))
    return out if dtype is None else out.astype(dtype)


# ---------------------------------------------------------------------------
# Path A: small graphs -- one fused, no-grid f32 call on a single padded slab.
# ---------------------------------------------------------------------------
def _gcn_fused_kernel(adj_ref, x_ref, w1_ref, b1_ref, w2_ref, b2_ref, out_ref):
    adj = adj_ref[...]                                                    # (Np, Np)
    xw = jnp.dot(x_ref[...], w1_ref[...], preferred_element_type=jnp.float32)
    h = jnp.dot(adj, xw, preferred_element_type=jnp.float32) + b1_ref[...]
    h = jnp.maximum(h, 0.0)
    hw = jnp.dot(h, w2_ref[...], preferred_element_type=jnp.float32)
    out_ref[...] = jnp.dot(adj, hw, preferred_element_type=jnp.float32) + b2_ref[...]


def gcn_forward_small(adj, x, w1, b1, w2, b2):
    n, f = x.shape
    h = w1.shape[1]
    c = w2.shape[1]
    np_ = _round_up(n, SUBLANE)
    fp = _round_up(f, LANE)
    hp = _round_up(h, LANE)
    cp = _round_up(c, LANE)                 # lane-dense output slab

    adj_p = _pad2(adj, np_, np_)
    x_p = _pad2(x, np_, fp)
    w1_p = _pad2(w1, fp, hp)
    b1_p = _pad2(b1, 1, hp)
    w2_p = _pad2(w2, hp, cp)
    b2_p = _pad2(b2, 1, cp)

    flops = 2 * (np_ * fp * hp + np_ * np_ * hp + np_ * hp * cp + np_ * np_ * cp)
    bytes_accessed = 4 * (np_ * np_ + np_ * fp + fp * hp + hp + hp * cp + cp + np_ * cp)

    vmem = pl.BlockSpec(memory_space=pltpu.MemorySpace.VMEM)
    out_p = pl.pallas_call(
        _gcn_fused_kernel,
        out_shape=jax.ShapeDtypeStruct((np_, cp), jnp.float32),
        in_specs=[vmem] * 6,
        out_specs=vmem,
        cost_estimate=pl.CostEstimate(flops=flops, transcendentals=0,
                                      bytes_accessed=bytes_accessed),
    )(adj_p, x_p, w1_p, b1_p, w2_p, b2_p)
    return out_p[:n, :c]


# ---------------------------------------------------------------------------
# Path B: tiled path -- two fused pallas_calls, bf16 operands, f32 accumulate.
# ---------------------------------------------------------------------------
def _gcn_layer1_kernel(adj_ref, x_ref, w1_ref, b1_ref, w2_ref, hw2_ref, acc_ref,
                       *, tile):
    """hW2[i-tile] = relu(A_hat[i,:] @ (X @ W1) + b1) @ W2, k-loop over columns."""
    k = pl.program_id(1)

    @pl.when(k == 0)
    def _init():
        acc_ref[...] = jnp.zeros_like(acc_ref)

    # On-the-fly feature transform for this k-slice of nodes.  X and W1 are
    # VMEM-resident (constant block index -> DMA'd once), so this costs no HBM
    # traffic; the extra (tile x F x H) MXU work hides under the adjacency DMA
    # (the kernel is HBM-bandwidth bound).  Re-computing per (i,k) step avoids
    # any cross-core init hazard under megacore sharding of the i axis.
    start = pl.multiple_of(k * tile, tile)
    xk = x_ref[pl.ds(start, tile), :]                                   # bf16
    xw = jnp.dot(xk, w1_ref[...], preferred_element_type=jnp.float32)   # f32
    acc_ref[...] += jnp.dot(adj_ref[...], xw.astype(adj_ref.dtype),
                            preferred_element_type=jnp.float32)

    @pl.when(k == pl.num_programs(1) - 1)
    def _finalize():
        h = jnp.maximum(acc_ref[...] + b1_ref[...], 0.0)                # f32
        hw2_ref[...] = jnp.dot(h.astype(w2_ref.dtype), w2_ref[...],
                               preferred_element_type=jnp.float32
                               ).astype(hw2_ref.dtype)


def _gcn_layer2_kernel(adj_ref, hw2_ref, b2_ref, out_ref, *, tile):
    """out[i-tile] = A_hat[i,:] @ hW2 + b2, accumulating directly into out_ref."""
    k = pl.program_id(1)

    @pl.when(k == 0)
    def _init():
        out_ref[...] = jnp.zeros_like(out_ref)

    start = pl.multiple_of(k * tile, tile)
    hk = hw2_ref[pl.ds(start, tile), :]                                 # bf16, resident
    out_ref[...] += jnp.dot(adj_ref[...], hk, preferred_element_type=jnp.float32)

    @pl.when(k == pl.num_programs(1) - 1)
    def _finalize():
        out_ref[...] += b2_ref[...]


def gcn_forward_tiled(adj, x, w1, b1, w2, b2, tile=_DEFAULT_TILE):
    n, f = x.shape
    h = w1.shape[1]
    c = w2.shape[1]

    # Prefer >= 2 blocks on the "parallel" row axis (v7x has 2 TensorCores);
    # keep tiles >= 256 when possible for DMA efficiency.
    while tile > 256 and pl.cdiv(n, tile) < 2:
        tile //= 2
    tile = min(tile, _round_up(n, SUBLANE))
    np_ = _round_up(n, tile)
    fp = _round_up(f, LANE)
    hp = _round_up(h, LANE)
    cp = _round_up(c, LANE)

    # bf16 operands (halved HBM traffic + faster MXU); f32 accumulation in-kernel.
    adj_p = _pad2(adj, np_, np_, jnp.bfloat16)
    x_p = _pad2(x, np_, fp, jnp.bfloat16)
    w1_p = _pad2(w1, fp, hp, jnp.bfloat16)
    w2_p = _pad2(w2, hp, cp, jnp.bfloat16)
    b1_p = _pad2(b1, 1, hp, jnp.float32)
    b2_p = _pad2(b2, 1, cp, jnp.float32)

    grid = (np_ // tile, np_ // tile)
    cparams = pltpu.CompilerParams(
        dimension_semantics=("parallel", "arbitrary"),
        vmem_limit_bytes=32 * 1024 * 1024,   # > v5e 16 MiB default, <= v6e/v7x defaults
    )

    # ---- layer 1 (fused): hW2 = relu(A_hat @ (X @ W1) + b1) @ W2 ----
    l1_flops = (2 * np_ * np_ * hp
                + 2 * (np_ // tile) * np_ * fp * hp
                + 2 * np_ * hp * cp)
    l1_bytes = 2 * (np_ * np_ + np_ * fp + fp * hp + hp * cp + np_ * cp) + 4 * hp
    hw2 = pl.pallas_call(
        functools.partial(_gcn_layer1_kernel, tile=tile),
        out_shape=jax.ShapeDtypeStruct((np_, cp), jnp.bfloat16),
        grid_spec=pltpu.PrefetchScalarGridSpec(
            num_scalar_prefetch=0,
            grid=grid,
            in_specs=[
                pl.BlockSpec((tile, tile), lambda i, k: (i, k)),   # A_hat tile (streams)
                pl.BlockSpec((np_, fp), lambda i, k: (0, 0)),      # X, VMEM-resident
                pl.BlockSpec((fp, hp), lambda i, k: (0, 0)),       # W1, resident
                pl.BlockSpec((1, hp), lambda i, k: (0, 0)),        # b1
                pl.BlockSpec((hp, cp), lambda i, k: (0, 0)),       # W2, resident
            ],
            out_specs=pl.BlockSpec((tile, cp), lambda i, k: (i, 0)),
            scratch_shapes=[pltpu.VMEM((tile, hp), jnp.float32)],  # f32 accumulator
        ),
        compiler_params=cparams,
        cost_estimate=pl.CostEstimate(flops=l1_flops, transcendentals=0,
                                      bytes_accessed=l1_bytes),
    )(adj_p, x_p, w1_p, b1_p, w2_p)

    # ---- layer 2: out = A_hat @ hW2 + b2 ----
    l2_flops = 2 * np_ * np_ * cp
    l2_bytes = 2 * (np_ * np_ + np_ * cp) + 4 * (cp + np_ * cp)
    out = pl.pallas_call(
        functools.partial(_gcn_layer2_kernel, tile=tile),
        out_shape=jax.ShapeDtypeStruct((np_, cp), jnp.float32),
        grid_spec=pltpu.PrefetchScalarGridSpec(
            num_scalar_prefetch=0,
            grid=grid,
            in_specs=[
                pl.BlockSpec((tile, tile), lambda i, k: (i, k)),   # A_hat tile (streams)
                pl.BlockSpec((np_, cp), lambda i, k: (0, 0)),      # hW2, VMEM-resident
                pl.BlockSpec((1, cp), lambda i, k: (0, 0)),        # b2
            ],
            out_specs=pl.BlockSpec((tile, cp), lambda i, k: (i, 0)),
        ),
        compiler_params=cparams,
        cost_estimate=pl.CostEstimate(flops=l2_flops, transcendentals=0,
                                      bytes_accessed=l2_bytes),
    )(adj_p, hw2, b2_p)

    return out[:n, :c]


def gcn_forward(adj, x, w1, b1, w2, b2):
    if x.shape[0] <= _SMALL_N:
        return gcn_forward_small(adj, x, w1, b1, w2, b2)
    return gcn_forward_tiled(adj, x, w1, b1, w2, b2)


# ---------------------------------------------------------------------------
# Graph / parameter helpers (plain JAX glue, not part of the kernels).
# ---------------------------------------------------------------------------
def normalized_adjacency(edge_index, num_nodes):
    """A_hat = D^{-1/2} (A + I) D^{-1/2}; edge (src, dst) sends msg src -> dst."""
    a = jnp.zeros((num_nodes, num_nodes), jnp.float32)
    if edge_index.shape[1] > 0:
        src = edge_index[0]
        dst = edge_index[1]
        a = a.at[dst, src].add(1.0)   # aggregation: out[dst] += norm * x[src]
    a = a + jnp.eye(num_nodes, dtype=jnp.float32)
    deg = a.sum(axis=1)
    dinv = 1.0 / jnp.sqrt(deg)
    return a * dinv[:, None] * dinv[None, :]


def glorot(key, shape):
    fan_in, fan_out = shape
    limit = float(np.sqrt(6.0 / (fan_in + fan_out)))
    return jax.random.uniform(key, shape, jnp.float32, -limit, limit)


def _ref_gcn(adj, x, w1, b1, w2, b2):
    h = jnp.maximum(adj @ (x @ w1) + b1, 0.0)
    return adj @ (h @ w2) + b2


def _ref_gcn_bf16(adj, x, w1, b1, w2, b2):
    """Reference matching the tiled kernel's mixed-precision pipeline."""
    bf, f32 = jnp.bfloat16, jnp.float32
    adjb = adj.astype(bf)
    xw = jnp.dot(x.astype(bf), w1.astype(bf), preferred_element_type=f32).astype(bf)
    h = jnp.maximum(jnp.dot(adjb, xw, preferred_element_type=f32) + b1, 0.0)
    hw = jnp.dot(h.astype(bf), w2.astype(bf), preferred_element_type=f32).astype(bf)
    return jnp.dot(adjb, hw, preferred_element_type=f32) + b2


if __name__ == "__main__":
    # ---- data from the demo script ----
    data_np = np.array([
        [2793, 77.45, 0.664, 9.9, 11.915, 4.6, 1, 1, 3],
        [2793.5, 78.26, 0.661, 14.2, 12.565, 4.1, 1, 0.979, 3],
        [2794, 79.05, 0.658, 14.8, 13.05, 3.6, 1, 0.957, 3],
        [2794.5, 86.1, 0.655, 13.9, 13.115, 3.5, 1, 0.936, 3],
        [2795, 74.58, 0.647, 13.5, 13.3, 3.4, 1, 0.915, 3],
        [2795.5, 73.97, 0.636, 14, 13.385, 3.6, 1, 0.894, 3],
        [2796, 73.72, 0.63, 15.6, 13.93, 3.7, 1, 0.872, 3],
        [2796.5, 75.65, 0.625, 16.5, 13.92, 3.5, 1, 0.83, 3],
        [2797, 73.79, 0.624, 16.2, 13.98, 3.4, 1, 0.809, 3],
        [2797.5, 76.89, 0.615, 16.9, 14.22, 3.5, 1, 0.787, 3],
        [2798, 76.11, 0.6, 14.8, 13.375, 3.6, 1, 0.766, 3],
        [2798.5, 74.95, 0.583, 13.3, 12.69, 3.7, 1, 0.745, 3],
        [2799, 71.87, 0.561, 11.3, 12.475, 3.5, 1, 0.723, 3],
        [2799.5, 83.42, 0.537, 13.3, 14.93, 3.4, 1, 0.702, 3],
        [2800, 90.1, 0.519, 14.3, 16.555, 3.2, 1, 0.681, 2],
        [2800.5, 78.15, 0.467, 11.8, 15.96, 3.1, 1, 0.638, 2],
        [2801, 69.3, 0.438, 9.5, 15.12, 3.1, 1, 0.617, 2],
        [2801.5, 63.54, 0.418, 8.8, 15.19, 3, 1, 0.596, 2],
        [2802, 63.87, 0.401, 7.2, 15.39, 2.9, 1, 0.574, 2],
    ])

    features = data_np[:, 1:-1]                       # (19, 7)
    x = jnp.asarray(features, dtype=jnp.float32)

    edges = []                                        # demo has no edges
    edge_index = jnp.zeros((2, len(edges)), dtype=jnp.int32)

    num_nodes, input_dim = x.shape                    # 19, 7
    hidden_dim = 16
    num_classes = 4                                   # label values in {2, 3} -> 4 classes

    key = jax.random.PRNGKey(0)
    k1, k2, k3, k4, k5, k6, k7 = jax.random.split(key, 7)

    # GCNConv-style params: weight (in, out), zero bias.
    w1 = glorot(k1, (input_dim, hidden_dim))
    b1 = jnp.zeros((1, hidden_dim), jnp.float32)
    w2 = glorot(k2, (hidden_dim, num_classes))
    b2 = jnp.zeros((1, num_classes), jnp.float32)

    adj = normalized_adjacency(edge_index, num_nodes)  # == I for empty edges

    # ---- toy graph (the spec) through the fused single-call f32 path ----
    out = gcn_forward(adj, x, w1, b1, w2, b2)
    out = jax.block_until_ready(out)
    out_ref = _ref_gcn(adj, x, w1, b1, w2, b2)
    assert out.shape == (num_nodes, num_classes)
    assert jnp.allclose(out, out_ref, atol=1e-4, rtol=1e-4)

    # ---- larger random graph exercising the tiled, bf16, 2-call path ----
    N2, F2, H2, C2 = 512, 7, 16, 4
    x2 = jax.random.normal(k3, (N2, F2), jnp.float32)
    n_edges = 2048
    src = jax.random.randint(k4, (n_edges,), 0, N2)
    dst = jax.random.randint(k5, (n_edges,), 0, N2)
    edge_index2 = jnp.stack([src, dst]).astype(jnp.int32)
    adj2 = normalized_adjacency(edge_index2, N2)
    w1b = glorot(k6, (F2, H2))
    b1b = jnp.zeros((1, H2), jnp.float32)
    w2b = glorot(k7, (H2, C2))
    b2b = jnp.zeros((1, C2), jnp.float32)

    out2 = gcn_forward(adj2, x2, w1b, b1b, w2b, b2b)   # N2 > _SMALL_N -> tiled path
    out2 = jax.block_until_ready(out2)
    out2_ref_bf = _ref_gcn_bf16(adj2, x2, w1b, b1b, w2b, b2b)
    out2_ref_f32 = _ref_gcn(adj2, x2, w1b, b1b, w2b, b2b)
    assert out2.shape == (N2, C2)
    assert jnp.allclose(out2, out2_ref_bf, atol=1e-2, rtol=1e-2)    # matches bf16 pipeline
    assert jnp.allclose(out2, out2_ref_f32, atol=1e-1, rtol=1e-1)   # sane vs f32 math

    print("KERNEL_OK")
</pallas_src>

<mosaic_0001>
module attributes {stable_mosaic.version = 11 : i64} {
  func.func @_gcn_fused_kernel(%arg0: memref<24x24xf32, #tpu.memory_space<vmem>>, %arg1: memref<24x128xf32, #tpu.memory_space<vmem>>, %arg2: memref<128x128xf32, #tpu.memory_space<vmem>>, %arg3: memref<1x128xf32, #tpu.memory_space<vmem>>, %arg4: memref<128x128xf32, #tpu.memory_space<vmem>>, %arg5: memref<1x128xf32, #tpu.memory_space<vmem>>, %arg6: memref<24x128xf32, #tpu.memory_space<vmem>>) attributes {dimension_semantics = [], scalar_prefetch = 0 : i64, scratch_operands = 0 : i64, tpu.core_type = #tpu.core_type<tc>} {
    %c0 = arith.constant 0 : index
    %c0_0 = arith.constant 0 : index
    %0 = vector.load %arg0[%c0, %c0_0] : memref<24x24xf32, #tpu.memory_space<vmem>>, vector<24x24xf32>
    %c0_1 = arith.constant 0 : index
    %c0_2 = arith.constant 0 : index
    %1 = vector.load %arg1[%c0_1, %c0_2] : memref<24x128xf32, #tpu.memory_space<vmem>>, vector<24x128xf32>
    %c0_3 = arith.constant 0 : index
    %c0_4 = arith.constant 0 : index
    %2 = vector.load %arg2[%c0_3, %c0_4] : memref<128x128xf32, #tpu.memory_space<vmem>>, vector<128x128xf32>
    %cst = arith.constant dense<0.000000e+00> : vector<24x128xf32>
    %3 = tpu.matmul %1, %2, %cst {dimension_numbers = #tpu.dot_dimension_numbers<[1], [0], [0], [1], [0, 0, 1, 1], [], []>} : vector<24x128xf32>, vector<128x128xf32>, vector<24x128xf32> -> vector<24x128xf32>
    %cst_5 = arith.constant dense<0.000000e+00> : vector<24x128xf32>
    %4 = tpu.matmul %0, %3, %cst_5 {dimension_numbers = #tpu.dot_dimension_numbers<[1], [0], [0], [1], [0, 0, 1, 1], [], []>} : vector<24x24xf32>, vector<24x128xf32>, vector<24x128xf32> -> vector<24x128xf32>
    %c0_6 = arith.constant 0 : index
    %c0_7 = arith.constant 0 : index
    %5 = vector.load %arg3[%c0_6, %c0_7] : memref<1x128xf32, #tpu.memory_space<vmem>>, vector<1x128xf32>
    %6 = vector.broadcast %5 : vector<1x128xf32> to vector<24x128xf32>
    %7 = arith.addf %4, %6 : vector<24x128xf32>
    %cst_8 = arith.constant 0.000000e+00 : f32
    %8 = vector.broadcast %cst_8 : f32 to vector<24x128xf32>
    %9 = arith.maximumf %7, %8 : vector<24x128xf32>
    %c0_9 = arith.constant 0 : index
    %c0_10 = arith.constant 0 : index
    %10 = vector.load %arg4[%c0_9, %c0_10] : memref<128x128xf32, #tpu.memory_space<vmem>>, vector<128x128xf32>
    %cst_11 = arith.constant dense<0.000000e+00> : vector<24x128xf32>
    %11 = tpu.matmul %9, %10, %cst_11 {dimension_numbers = #tpu.dot_dimension_numbers<[1], [0], [0], [1], [0, 0, 1, 1], [], []>} : vector<24x128xf32>, vector<128x128xf32>, vector<24x128xf32> -> vector<24x128xf32>
    %cst_12 = arith.constant dense<0.000000e+00> : vector<24x128xf32>
    %12 = tpu.matmul %0, %11, %cst_12 {dimension_numbers = #tpu.dot_dimension_numbers<[1], [0], [0], [1], [0, 0, 1, 1], [], []>} : vector<24x24xf32>, vector<24x128xf32>, vector<24x128xf32> -> vector<24x128xf32>
    %c0_13 = arith.constant 0 : index
    %c0_14 = arith.constant 0 : index
    %13 = vector.load %arg5[%c0_13, %c0_14] : memref<1x128xf32, #tpu.memory_space<vmem>>, vector<1x128xf32>
    %14 = vector.broadcast %13 : vector<1x128xf32> to vector<24x128xf32>
    %15 = arith.addf %12, %14 : vector<24x128xf32>
    %c0_15 = arith.constant 0 : index
    %c0_16 = arith.constant 0 : index
    %16 = vector.load %arg6[%c0_15, %c0_16] : memref<24x128xf32, #tpu.memory_space<vmem>>, vector<24x128xf32>
    tpu.vector_store %arg6[%c0_15, %c0_16], %15 {strides = array<i32>} : memref<24x128xf32, #tpu.memory_space<vmem>>, vector<24x128xf32>,
    return
  }
}

</mosaic_0001>

<llo_original>
// kernel: tpu_custom_call.1
$region0: #{tpu_custom_call.1}
  #allocation0 [shape = 'u32[]', space=smem, size = 0x4, offset = 0x4, fixed_abs, tag = 'smem constant byte address 0x4 - core index']
  #allocation1 [shape = 'u32[144,128]{1,0:T(1,128)}', space=vmem, size = 0x12000, scoped, tag = 'internal scratch']
  %s0 = inlined_call_operand.hbm [shape: f32[24,24], index: 0, kind: input, shape index: {}]
  %s1 = inlined_call_operand.hbm [shape: f32[24,128], index: 1, kind: input, shape index: {}]
  %s2 = inlined_call_operand.hbm [shape: f32[128,128], index: 2, kind: input, shape index: {}]
  %s3 = inlined_call_operand.vmem [shape: f32[1,128], index: 3, kind: input, shape index: {}]
  %s4 = inlined_call_operand.hbm [shape: f32[128,128], index: 4, kind: input, shape index: {}]
  %s5 = inlined_call_operand.vmem [shape: f32[1,128], index: 5, kind: input, shape index: {}]
  %s6 = inlined_call_operand.hbm [shape: f32[24,128], index: 6, kind: output, shape index: {}]
  %s7 = sld [smem:[#allocation0]]
  $region50: #{tpu_custom_call.1} parent=0
    _
  %s9 = ssub.s32 1, %s7
  %s10 = scalar_select 0, %s9, %s7
  $region1: #{tpu_custom_call.1} parent=0
    #allocation2 [shape = 'u8[12288]{0}', space=vmem, size = 0x3000, scoped, tag = 'input window, operand 0, single buffered']
    #allocation3 [shape = 's32[1]{0}', space=sflag, size = 0x4, scoped, tag = 'scoped memory for tpu_custom_call.1']
    #allocation4 [shape = 's32[1]{0}', space=sflag, size = 0x4, scoped, tag = 'scoped memory for tpu_custom_call.1']
    #allocation5 [shape = 'u8[12288]{0}', space=vmem, size = 0x3000, scoped, tag = 'input window, operand 1, single buffered']
    #allocation6 [shape = 's32[1]{0}', space=sflag, size = 0x4, scoped, tag = 'scoped memory for tpu_custom_call.1']
    #allocation7 [shape = 'u8[65536]{0}', space=vmem, size = 0x10000, scoped, tag = 'input window, operand 2, single buffered']
    #allocation8 [shape = 'u8[65536]{0}', space=vmem, size = 0x10000, scoped, tag = 'input window, operand 4, single buffered']
    #allocation9 [shape = 's32[1]{0}', space=sflag, size = 0x4, scoped, tag = 'scoped memory for tpu_custom_call.1']
    #allocation10 [shape = 'u8[12288]{0}', space=vmem, size = 0x3000, scoped, tag = 'output window, operand 0, single buffered']
    %11 = vsyncpa [#allocation3], 0
    %12 = vsyncpa [#allocation6], 0
    %13 = vsyncpa [#allocation9], 0
    %14 = vsyncpa [#allocation4], 0
    // Predicated region
    $region2: #{tpu_custom_call.1} parent=1 // pred_check
      _
    $region3: #{tpu_custom_call.1} parent=1 // pred_check_branch
      %16 = sbr.rel (0) target = $region5
    $region4: #{tpu_custom_call.1} parent=1 // pred_region
      %s18 = ssub.s32 384, 384
      %19 = vsyncadd [#allocation3], %s18
      %s20 = sshll.u32 [#allocation2], 4
      %s21 = int_to_ptr.vmem [resolvable:$true] %s20
      %26 = dma.hbm_to_vmem [thread:$0]  %s0, 384, %s21, [#allocation3], 128, 128, 8
    $region5: #{tpu_custom_call.1} parent=1 // pred_fallthru
      _
    // Predicated region
    $region6: #{tpu_custom_call.1} parent=1 // pred_check
      _
    $region7: #{tpu_custom_call.1} parent=1 // pred_check_branch
      %28 = sbr.rel (0) target = $region9
    $region8: #{tpu_custom_call.1} parent=1 // pred_region
      %s30 = ssub.s32 384, 384
      %31 = vsyncadd [#allocation6], %s30
      %s32 = sshll.u32 [#allocation5], 4
      %s33 = int_to_ptr.vmem [resolvable:$true] %s32
      %38 = dma.hbm_to_vmem [thread:$0]  %s1, 384, %s33, [#allocation6], 128, 128, 8
    $region9: #{tpu_custom_call.1} parent=1 // pred_fallthru
      _
    // Predicated region
    $region10: #{tpu_custom_call.1} parent=1 // pred_check
      _
    $region11: #{tpu_custom_call.1} parent=1 // pred_check_branch
      %40 = sbr.rel (0) target = $region13
    $region12: #{tpu_custom_call.1} parent=1 // pred_region
      %s42 = ssub.s32 2048, 2048
      %43 = vsyncadd [#allocation6], %s42
      %s44 = sshll.u32 [#allocation7], 4
      %s45 = int_to_ptr.vmem [resolvable:$true] %s44
      %50 = dma.hbm_to_vmem [thread:$0]  %s2, 2048, %s45, [#allocation6], 128, 128, 8
    $region13: #{tpu_custom_call.1} parent=1 // pred_fallthru
      _
    // Predicated region
    $region14: #{tpu_custom_call.1} parent=1 // pred_check
      _
    $region15: #{tpu_custom_call.1} parent=1 // pred_check_branch
      %52 = sbr.rel (0) target = $region17
    $region16: #{tpu_custom_call.1} parent=1 // pred_region
      _
    $region17: #{tpu_custom_call.1} parent=1 // pred_fallthru
      _
    // Predicated region
    $region18: #{tpu_custom_call.1} parent=1 // pred_check
      _
    $region19: #{tpu_custom_call.1} parent=1 // pred_check_branch
      %54 = sbr.rel (0) target = $region21
    $region20: #{tpu_custom_call.1} parent=1 // pred_region
      %s56 = ssub.s32 2048, 2048
      %57 = vsyncadd [#allocation9], %s56
      %s58 = sshll.u32 [#allocation8], 4
      %s59 = int_to_ptr.vmem [resolvable:$true] %s58
      %64 = dma.hbm_to_vmem [thread:$0]  %s4, 2048, %s59, [#allocation9], 128, 128, 8
    $region21: #{tpu_custom_call.1} parent=1 // pred_fallthru
      _
    // Predicated region
    $region22: #{tpu_custom_call.1} parent=1 // pred_check
      _
    $region23: #{tpu_custom_call.1} parent=1 // pred_check_branch
      %66 = sbr.rel (0) target = $region25
    $region24: #{tpu_custom_call.1} parent=1 // pred_region
      _
    $region25: #{tpu_custom_call.1} parent=1 // pred_fallthru
      _
    // Predicated region
    $region26: #{tpu_custom_call.1} parent=1 // pred_check
      _
    $region27: #{tpu_custom_call.1} parent=1 // pred_check_branch
      %68 = sbr.rel (0) target = $region29
    $region28: #{tpu_custom_call.1} parent=1 // pred_region
      %69 = dma.done [#allocation3], 384
    $region29: #{tpu_custom_call.1} parent=1 // pred_fallthru
      _
    // Predicated region
    $region30: #{tpu_custom_call.1} parent=1 // pred_check
      _
    $region31: #{tpu_custom_call.1} parent=1 // pred_check_branch
      %71 = sbr.rel (0) target = $region33
    $region32: #{tpu_custom_call.1} parent=1 // pred_region
      %72 = dma.done [#allocation6], 384
    $region33: #{tpu_custom_call.1} parent=1 // pred_fallthru
      _
    // Predicated region
    $region34: #{tpu_custom_call.1} parent=1 // pred_check
      _
    $region35: #{tpu_custom_call.1} parent=1 // pred_check_branch
      %74 = sbr.rel (0) target = $region37
    $region36: #{tpu_custom_call.1} parent=1 // pred_region
      %75 = dma.done [#allocation6], 2048
    $region37: #{tpu_custom_call.1} parent=1 // pred_fallthru
      _
    // Predicated region
    $region38: #{tpu_custom_call.1} parent=1 // pred_check
      _
    $region39: #{tpu_custom_call.1} parent=1 // pred_check_branch
      %77 = sbr.rel (0) target = $region41
    $region40: #{tpu_custom_call.1} parent=1 // pred_region
      %78 = dma.done [#allocation9], 2048
    $region41: #{tpu_custom_call.1} parent=1 // pred_fallthru
      _
    %v79 = vld [vmem:[#allocation2] sm:$0xff]
    %v80 = vld [vmem:[#allocation2 + $0x8] sm:$0xff]
    %v81 = vld [vmem:[#allocation2 + $0x10] sm:$0xff]
    %v82 = vld [vmem:[#allocation5] sm:$0xff]
    %v83 = vld [vmem:[#allocation5 + $0x8] sm:$0xff]
    %v84 = vld [vmem:[#allocation5 + $0x10] sm:$0xff]
    %v85 = vld [vmem:[#allocation7] sm:$0xff]
    %v86 = vld [vmem:[#allocation7 + $0x8] sm:$0xff]
    %v87 = vld [vmem:[#allocation7 + $0x10] sm:$0xff]
    %v88 = vld [vmem:[#allocation7 + $0x18] sm:$0xff]
    %v89 = vld [vmem:[#allocation7 + $0x20] sm:$0xff]
    %v90 = vld [vmem:[#allocation7 + $0x28] sm:$0xff]
    %v91 = vld [vmem:[#allocation7 + $0x30] sm:$0xff]
    %v92 = vld [vmem:[#allocation7 + $0x38] sm:$0xff]
    %v93 = vld [vmem:[#allocation7 + $0x40] sm:$0xff]
    %v94 = vld [vmem:[#allocation7 + $0x48] sm:$0xff]
    %v95 = vld [vmem:[#allocation7 + $0x50] sm:$0xff]
    %v96 = vld [vmem:[#allocation7 + $0x58] sm:$0xff]
    %v97 = vld [vmem:[#allocation7 + $0x60] sm:$0xff]
    %v98 = vld [vmem:[#allocation7 + $0x68] sm:$0xff]
    %v99 = vld [vmem:[#allocation7 + $0x70] sm:$0xff]
    %v100 = vld [vmem:[#allocation7 + $0x78] sm:$0xff]
    %101 = vmatprep.subr.mxu0 0.0
    %102 = vmatpush1.msra.mxu0 %v85
    %103 = vmatprep.subr.mxu0 0.0
    %104 = vmatpush1.msra.mxu0 %v86
    %105 = vmatprep.subr.mxu0 0.0
    %106 = vmatpush1.msra.mxu0 %v87
    %107 = vmatprep.subr.mxu0 0.0
    %108 = vmatpush1.msra.mxu0 %v88
    %109 = vmatprep.subr.mxu0 0.0
    %110 = vmatpush1.msra.mxu0 %v89
    %111 = vmatprep.subr.mxu0 0.0
    %112 = vmatpush1.msra.mxu0 %v90
    %113 = vmatprep.subr.mxu0 0.0
    %114 = vmatpush1.msra.mxu0 %v91
    %115 = vmatprep.subr.mxu0 0.0
    %116 = vmatpush1.msra.mxu0 %v92
    %117 = vmatprep.subr.mxu0 0.0
    %118 = vmatpush1.msra.mxu0 %v93
    %119 = vmatprep.subr.mxu0 0.0
    %120 = vmatpush1.msra.mxu0 %v94
    %121 = vmatprep.subr.mxu0 0.0
    %122 = vmatpush1.msra.mxu0 %v95
    %123 = vmatprep.subr.mxu0 0.0
    %124 = vmatpush1.msra.mxu0 %v96
    %125 = vmatprep.subr.mxu0 0.0
    %126 = vmatpush1.msra.mxu0 %v97
    %127 = vmatprep.subr.mxu0 0.0
    %128 = vmatpush1.msra.mxu0 %v98
    %129 = vmatprep.subr.mxu0 0.0
    %130 = vmatpush1.msra.mxu0 %v99
    %131 = vmatprep.subr.mxu0 0.0
    %132 = vmatpush1.msra.mxu0 %v100
    %133 = vmatprep.subr.mxu0 0.0
    %134 = vmatpush1.msra.mxu0 0.0
    %135 = vmatprep.subr.mxu0 0.0
    %136 = vmatpush1.msra.mxu0 0.0
    %137 = vmatprep.subr.mxu0 0.0
    %138 = vmatpush1.msra.mxu0 0.0
    %139 = vmatprep.subr.mxu0 0.0
    %140 = vmatpush1.msra.mxu0 0.0
    %141 = vmatprep.subr.mxu0 0.0
    %142 = vmatpush1.msra.mxu0 0.0
    %143 = vmatprep.subr.mxu0 0.0
    %144 = vmatpush1.msra.mxu0 0.0
    %145 = vmatprep.subr.mxu0 0.0
    %146 = vmatpush1.msra.mxu0 0.0
    %147 = vmatprep.subr.mxu0 0.0
    %148 = vmatpush1.msra.mxu0 0.0
    %149 = vmatprep.subr.mxu0 0.0
    %150 = vmatpush1.msra.mxu0 0.0
    %151 = vmatprep.subr.mxu0 0.0
    %152 = vmatpush1.msra.mxu0 0.0
    %153 = vmatprep.subr.mxu0 0.0
    %154 = vmatpush1.msra.mxu0 0.0
    %155 = vmatprep.subr.mxu0 0.0
    %156 = vmatpush1.msra.mxu0 0.0
    %157 = vmatprep.subr.mxu0 0.0
    %158 = vmatpush1.msra.mxu0 0.0
    %159 = vmatprep.subr.mxu0 0.0
    %160 = vmatpush1.msra.mxu0 0.0
    %161 = vmatprep.subr.mxu0 0.0
    %162 = vmatpush1.msra.mxu0 0.0
    %163 = vmatprep.subr.mxu0 0.0
    %164 = vmatpush1.msra.mxu0 0.0
    %165 = vmatprep.mubr.f32.mxu0 0.0
    %166 = vmatmul.mubr.f32.gmra.mrb[0].mxu0 %v82
    %v167 = vpop.f32.mrb[0].mxu0
    %v168 = vadd.f32 0.0, %v167
    %v169 = vpop.f32.mrb[0].mxu0
    %170 = vmatprep.mubr.f32.mxu0 0.0
    %171 = vmatmul.mubr.f32.gmra.mrb[0].mxu0 %v83
    %v172 = vpop.f32.mrb[0].mxu0
    %v173 = vadd.f32 0.0, %v172
    %v174 = vpop.f32.mrb[0].mxu0
    %175 = vmatprep.mubr.f32.mxu0 0.0
    %176 = vmatmul.mubr.f32.gmra.mrb[0].mxu0 %v84
    %v177 = vpop.f32.mrb[0].mxu0
    %v178 = vadd.f32 0.0, %v177
    %v179 = vpop.f32.mrb[0].mxu0
    %180 = vdwg.mxu0
    %v181 = vld [vmem:[%s3] sm:$0x1]
    %v183 = vlaneseq
    %v184 = vshrl.u32 %v183, 7
    %v185 = vsub.s32 0, %v184
    %v186 = vrot.slane %v181, %v185
    %vm188 = vcmask 195584
    %v190 = vsel %vm188, %v79, 0
    %v193 = vsel %vm188, %v80, 0
    %v196 = vsel %vm188, %v81, 0
    %198 = vmatprep.subr.mxu0 0.0
    %199 = vmatpush1.msra.mxu0 %v168
    %200 = vmatprep.subr.mxu0 0.0
    %201 = vmatpush1.msra.mxu0 %v173
    %202 = vmatprep.subr.mxu0 0.0
    %203 = vmatpush1.msra.mxu0 %v178
    %204 = vmatprep.subr.mxu0 0.0
    %205 = vmatpush1.msra.mxu0 0.0
    %206 = vmatprep.subr.mxu0 0.0
    %207 = vmatpush1.msra.mxu0 0.0
    %208 = vmatprep.subr.mxu0 0.0
    %209 = vmatpush1.msra.mxu0 0.0
    %210 = vmatprep.subr.mxu0 0.0
    %211 = vmatpush1.msra.mxu0 0.0
    %212 = vmatprep.subr.mxu0 0.0
    %213 = vmatpush1.msra.mxu0 0.0
    %214 = vmatprep.subr.mxu0 0.0
    %215 = vmatpush1.msra.mxu0 0.0
    %216 = vmatprep.subr.mxu0 0.0
    %217 = vmatpush1.msra.mxu0 0.0
    %218 = vmatprep.subr.mxu0 0.0
    %219 = vmatpush1.msra.mxu0 0.0
    %220 = vmatprep.subr.mxu0 0.0
    %221 = vmatpush1.msra.mxu0 0.0
    %222 = vmatprep.subr.mxu0 0.0
    %223 = vmatpush1.msra.mxu0 0.0
    %224 = vmatprep.subr.mxu0 0.0
    %225 = vmatpush1.msra.mxu0 0.0
    %226 = vmatprep.subr.mxu0 0.0
    %227 = vmatpush1.msra.mxu0 0.0
    %228 = vmatprep.subr.mxu0 0.0
    %229 = vmatpush1.msra.mxu0 0.0
    %230 = vmatprep.subr.mxu0 0.0
    %231 = vmatpush1.msra.mxu0 0.0
    %232 = vmatprep.subr.mxu0 0.0
    %233 = vmatpush1.msra.mxu0 0.0
    %234 = vmatprep.subr.mxu0 0.0
    %235 = vmatpush1.msra.mxu0 0.0
    %236 = vmatprep.subr.mxu0 0.0
    %237 = vmatpush1.msra.mxu0 0.0
    %238 = vmatprep.subr.mxu0 0.0
    %239 = vmatpush1.msra.mxu0 0.0
    %240 = vmatprep.subr.mxu0 0.0
    %241 = vmatpush1.msra.mxu0 0.0
    %242 = vmatprep.subr.mxu0 0.0
    %243 = vmatpush1.msra.mxu0 0.0
    %244 = vmatprep.subr.mxu0 0.0
    %245 = vmatpush1.msra.mxu0 0.0
    %246 = vmatprep.subr.mxu0 0.0
    %247 = vmatpush1.msra.mxu0 0.0
    %248 = vmatprep.subr.mxu0 0.0
    %249 = vmatpush1.msra.mxu0 0.0
    %250 = vmatprep.subr.mxu0 0.0
    %251 = vmatpush1.msra.mxu0 0.0
    %252 = vmatprep.subr.mxu0 0.0
    %253 = vmatpush1.msra.mxu0 0.0
    %254 = vmatprep.subr.mxu0 0.0
    %255 = vmatpush1.msra.mxu0 0.0
    %256 = vmatprep.subr.mxu0 0.0
    %257 = vmatpush1.msra.mxu0 0.0
    %258 = vmatprep.subr.mxu0 0.0
    %259 = vmatpush1.msra.mxu0 0.0
    %260 = vmatprep.subr.mxu0 0.0
    %261 = vmatpush1.msra.mxu0 0.0
    %262 = vmatprep.mubr.f32.mxu0 0.0
    %263 = vmatmul.mubr.f32.gmra.mrb[0].mxu0 %v190
    %v264 = vpop.f32.mrb[0].mxu0
    %v265 = vadd.f32 %v186, %v264
    %v266 = vpop.f32.mrb[0].mxu0
    %267 = vmatprep.mubr.f32.mxu0 0.0
    %268 = vmatmul.mubr.f32.gmra.mrb[0].mxu0 %v193
    %v269 = vpop.f32.mrb[0].mxu0
    %v270 = vadd.f32 %v186, %v269
    %v271 = vpop.f32.mrb[0].mxu0
    %272 = vmatprep.mubr.f32.mxu0 0.0
    %273 = vmatmul.mubr.f32.gmra.mrb[0].mxu0 %v196
    %v274 = vpop.f32.mrb[0].mxu0
    %v275 = vadd.f32 %v186, %v274
    %v276 = vpop.f32.mrb[0].mxu0
    %277 = vdwg.mxu0
    %v278 = vmax.f32 %v265, 0.0
    %v279 = vmax.f32 %v270, 0.0
    %v280 = vmax.f32 %v275, 0.0
    %v281 = vld [vmem:[#allocation8] sm:$0xff]
    %v282 = vld [vmem:[#allocation8 + $0x8] sm:$0xff]
    %v283 = vld [vmem:[#allocation8 + $0x10] sm:$0xff]
    %v284 = vld [vmem:[#allocation8 + $0x18] sm:$0xff]
    %v285 = vld [vmem:[#allocation8 + $0x20] sm:$0xff]
    %v286 = vld [vmem:[#allocation8 + $0x28] sm:$0xff]
    %v287 = vld [vmem:[#allocation8 + $0x30] sm:$0xff]
    %v288 = vld [vmem:[#allocation8 + $0x38] sm:$0xff]
    %v289 = vld [vmem:[#allocation8 + $0x40] sm:$0xff]
    %v290 = vld [vmem:[#allocation8 + $0x48] sm:$0xff]
    %v291 = vld [vmem:[#allocation8 + $0x50] sm:$0xff]
    %v292 = vld [vmem:[#allocation8 + $0x58] sm:$0xff]
    %v293 = vld [vmem:[#allocation8 + $0x60] sm:$0xff]
    %v294 = vld [vmem:[#allocation8 + $0x68] sm:$0xff]
    %v295 = vld [vmem:[#allocation8 + $0x70] sm:$0xff]
    %v296 = vld [vmem:[#allocation8 + $0x78] sm:$0xff]
    %297 = vmatprep.subr.mxu0 0.0
    %298 = vmatpush1.msra.mxu0 %v281
    %299 = vmatprep.subr.mxu0 0.0
    %300 = vmatpush1.msra.mxu0 %v282
    %301 = vmatprep.subr.mxu0 0.0
    %302 = vmatpush1.msra.mxu0 %v283
    %303 = vmatprep.subr.mxu0 0.0
    %304 = vmatpush1.msra.mxu0 %v284
    %305 = vmatprep.subr.mxu0 0.0
    %306 = vmatpush1.msra.mxu0 %v285
    %307 = vmatprep.subr.mxu0 0.0
    %308 = vmatpush1.msra.mxu0 %v286
    %309 = vmatprep.subr.mxu0 0.0
    %310 = vmatpush1.msra.mxu0 %v287
    %311 = vmatprep.subr.mxu0 0.0
    %312 = vmatpush1.msra.mxu0 %v288
    %313 = vmatprep.subr.mxu0 0.0
    %314 = vmatpush1.msra.mxu0 %v289
    %315 = vmatprep.subr.mxu0 0.0
    %316 = vmatpush1.msra.mxu0 %v290
    %317 = vmatprep.subr.mxu0 0.0
    %318 = vmatpush1.msra.mxu0 %v291
    %319 = vmatprep.subr.mxu0 0.0
    %320 = vmatpush1.msra.mxu0 %v292
    %321 = vmatprep.subr.mxu0 0.0
    %322 = vmatpush1.msra.mxu0 %v293
    %323 = vmatprep.subr.mxu0 0.0
    %324 = vmatpush1.msra.mxu0 %v294
    %325 = vmatprep.subr.mxu0 0.0
    %326 = vmatpush1.msra.mxu0 %v295
    %327 = vmatprep.subr.mxu0 0.0
    %328 = vmatpush1.msra.mxu0 %v296
    %329 = vmatprep.subr.mxu0 0.0
    %330 = vmatpush1.msra.mxu0 0.0
    %331 = vmatprep.subr.mxu0 0.0
    %332 = vmatpush1.msra.mxu0 0.0
    %333 = vmatprep.subr.mxu0 0.0
    %334 = vmatpush1.msra.mxu0 0.0
    %335 = vmatprep.subr.mxu0 0.0
    %336 = vmatpush1.msra.mxu0 0.0
    %337 = vmatprep.subr.mxu0 0.0
    %338 = vmatpush1.msra.mxu0 0.0
    %339 = vmatprep.subr.mxu0 0.0
    %340 = vmatpush1.msra.mxu0 0.0
    %341 = vmatprep.subr.mxu0 0.0
    %342 = vmatpush1.msra.mxu0 0.0
    %343 = vmatprep.subr.mxu0 0.0
    %344 = vmatpush1.msra.mxu0 0.0
    %345 = vmatprep.subr.mxu0 0.0
    %346 = vmatpush1.msra.mxu0 0.0
    %347 = vmatprep.subr.mxu0 0.0
    %348 = vmatpush1.msra.mxu0 0.0
    %349 = vmatprep.subr.mxu0 0.0
    %350 = vmatpush1.msra.mxu0 0.0
    %351 = vmatprep.subr.mxu0 0.0
    %352 = vmatpush1.msra.mxu0 0.0
    %353 = vmatprep.subr.mxu0 0.0
    %354 = vmatpush1.msra.mxu0 0.0
    %355 = vmatprep.subr.mxu0 0.0
    %356 = vmatpush1.msra.mxu0 0.0
    %357 = vmatprep.subr.mxu0 0.0
    %358 = vmatpush1.msra.mxu0 0.0
    %359 = vmatprep.subr.mxu0 0.0
    %360 = vmatpush1.msra.mxu0 0.0
    %361 = vmatprep.mubr.f32.mxu0 0.0
    %362 = vmatmul.mubr.f32.gmra.mrb[0].mxu0 %v278
    %v363 = vpop.f32.mrb[0].mxu0
    %v364 = vadd.f32 0.0, %v363
    %v365 = vpop.f32.mrb[0].mxu0
    %366 = vmatprep.mubr.f32.mxu0 0.0
    %367 = vmatmul.mubr.f32.gmra.mrb[0].mxu0 %v279
    %v368 = vpop.f32.mrb[0].mxu0
    %v369 = vadd.f32 0.0, %v368
    %v370 = vpop.f32.mrb[0].mxu0
    %371 = vmatprep.mubr.f32.mxu0 0.0
    %372 = vmatmul.mubr.f32.gmra.mrb[0].mxu0 %v280
    %v373 = vpop.f32.mrb[0].mxu0
    %v374 = vadd.f32 0.0, %v373
    %v375 = vpop.f32.mrb[0].mxu0
    %376 = vdwg.mxu0
    %v377 = vld [vmem:[%s5] sm:$0x1]
    %v379 = vlaneseq
    %v380 = vshrl.u32 %v379, 7
    %v381 = vsub.s32 0, %v380
    %v382 = vrot.slane %v377, %v381
    %384 = vmatprep.subr.mxu0 0.0
    %385 = vmatpush1.msra.mxu0 %v364
    %386 = vmatprep.subr.mxu0 0.0
    %387 = vmatpush1.msra.mxu0 %v369
    %388 = vmatprep.subr.mxu0 0.0
    %389 = vmatpush1.msra.mxu0 %v374
    %390 = vmatprep.subr.mxu0 0.0
    %391 = vmatpush1.msra.mxu0 0.0
    %392 = vmatprep.subr.mxu0 0.0
    %393 = vmatpush1.msra.mxu0 0.0
    %394 = vmatprep.subr.mxu0 0.0
    %395 = vmatpush1.msra.mxu0 0.0
    %396 = vmatprep.subr.mxu0 0.0
    %397 = vmatpush1.msra.mxu0 0.0
    %398 = vmatprep.subr.mxu0 0.0
    %399 = vmatpush1.msra.mxu0 0.0
    %400 = vmatprep.subr.mxu0 0.0
    %401 = vmatpush1.msra.mxu0 0.0
    %402 = vmatprep.subr.mxu0 0.0
    %403 = vmatpush1.msra.mxu0 0.0
    %404 = vmatprep.subr.mxu0 0.0
    %405 = vmatpush1.msra.mxu0 0.0
    %406 = vmatprep.subr.mxu0 0.0
    %407 = vmatpush1.msra.mxu0 0.0
    %408 = vmatprep.subr.mxu0 0.0
    %409 = vmatpush1.msra.mxu0 0.0
    %410 = vmatprep.subr.mxu0 0.0
    %411 = vmatpush1.msra.mxu0 0.0
    %412 = vmatprep.subr.mxu0 0.0
    %413 = vmatpush1.msra.mxu0 0.0
    %414 = vmatprep.subr.mxu0 0.0
    %415 = vmatpush1.msra.mxu0 0.0
    %416 = vmatprep.subr.mxu0 0.0
    %417 = vmatpush1.msra.mxu0 0.0
    %418 = vmatprep.subr.mxu0 0.0
    %419 = vmatpush1.msra.mxu0 0.0
    %420 = vmatprep.subr.mxu0 0.0
    %421 = vmatpush1.msra.mxu0 0.0
    %422 = vmatprep.subr.mxu0 0.0
    %423 = vmatpush1.msra.mxu0 0.0
    %424 = vmatprep.subr.mxu0 0.0
    %425 = vmatpush1.msra.mxu0 0.0
    %426 = vmatprep.subr.mxu0 0.0
    %427 = vmatpush1.msra.mxu0 0.0
    %428 = vmatprep.subr.mxu0 0.0
    %429 = vmatpush1.msra.mxu0 0.0
    %430 = vmatprep.subr.mxu0 0.0
    %431 = vmatpush1.msra.mxu0 0.0
    %432 = vmatprep.subr.mxu0 0.0
    %433 = vmatpush1.msra.mxu0 0.0
    %434 = vmatprep.subr.mxu0 0.0
    %435 = vmatpush1.msra.mxu0 0.0
    %436 = vmatprep.subr.mxu0 0.0
    %437 = vmatpush1.msra.mxu0 0.0
    %438 = vmatprep.subr.mxu0 0.0
    %439 = vmatpush1.msra.mxu0 0.0
    %440 = vmatprep.subr.mxu0 0.0
    %441 = vmatpush1.msra.mxu0 0.0
    %442 = vmatprep.subr.mxu0 0.0
    %443 = vmatpush1.msra.mxu0 0.0
    %444 = vmatprep.subr.mxu0 0.0
    %445 = vmatpush1.msra.mxu0 0.0
    %446 = vmatprep.subr.mxu0 0.0
    %447 = vmatpush1.msra.mxu0 0.0
    %448 = vmatprep.mubr.f32.mxu0 0.0
    %449 = vmatmul.mubr.f32.gmra.mrb[0].mxu0 %v190
    %v450 = vpop.f32.mrb[0].mxu0
    %v451 = vadd.f32 %v382, %v450
    %v452 = vpop.f32.mrb[0].mxu0
    %453 = vmatprep.mubr.f32.mxu0 0.0
    %454 = vmatmul.mubr.f32.gmra.mrb[0].mxu0 %v193
    %v455 = vpop.f32.mrb[0].mxu0
    %v456 = vadd.f32 %v382, %v455
    %v457 = vpop.f32.mrb[0].mxu0
    %458 = vmatprep.mubr.f32.mxu0 0.0
    %459 = vmatmul.mubr.f32.gmra.mrb[0].mxu0 %v196
    %v460 = vpop.f32.mrb[0].mxu0
    %v461 = vadd.f32 %v382, %v460
    %v462 = vpop.f32.mrb[0].mxu0
    %463 = vdwg.mxu0
    %464 = vst [vmem:[#allocation10] sm:$0xff] %v451
    %465 = vst [vmem:[#allocation10 + $0x8] sm:$0xff] %v456
    %466 = vst [vmem:[#allocation10 + $0x10] sm:$0xff] %v461
    // Predicated region
    $region42: #{tpu_custom_call.1} parent=1 // pred_check
      _
    $region43: #{tpu_custom_call.1} parent=1 // pred_check_branch
      %468 = sbr.rel (0) target = $region45
    $region44: #{tpu_custom_call.1} parent=1 // pred_region
      %s470 = ssub.s32 384, 384
      %471 = vsyncadd [#allocation4], %s470
      %s472 = sshll.u32 [#allocation10], 4
      %s473 = int_to_ptr.vmem [resolvable:$true] %s472
      %478 = dma.vmem_to_hbm [thread:$0]  %s473, 384, %s6, [#allocation4], 128, 128, 8
    $region45: #{tpu_custom_call.1} parent=1 // pred_fallthru
      _
    // Predicated region
    $region46: #{tpu_custom_call.1} parent=1 // pred_check
      _
    $region47: #{tpu_custom_call.1} parent=1 // pred_check_branch
      %480 = sbr.rel (0) target = $region49
    $region48: #{tpu_custom_call.1} parent=1 // pred_region
      %481 = dma.done [#allocation4], 384
    $region49: #{tpu_custom_call.1} parent=1 // pred_fallthru
      _
    %482 = vsyncpa [#allocation3], 1
    %483 = vsyncpa [#allocation6], 1
    %484 = vsyncpa [#allocation9], 1
    %485 = vsyncpa [#allocation4], 1

</llo_original>
